<compile_context>
chip_gen: v6e
topology: v6e:2x2x1
jax: 0.10.0
libtpu: 0.0.40
codegen_flags: <defaults>
</compile_context>

<pallas_src>
import numpy as np
import jax
import jax.numpy as jnp
from jax.experimental import pallas as pl
from jax.experimental.pallas import tpu as pltpu

LATENT_DIM = 32


def _hyper_adapter_kernel(z_ref, w_ref, b_ref, o_ref):
    # z_ref: (B_pad, D) resident   w_ref: (D, tv)   b_ref: (1, tv)   o_ref: (tb, tv)
    tb = o_ref.shape[0]
    row0 = pl.multiple_of(pl.program_id(1) * tb, tb)
    z_blk = z_ref[pl.ds(row0, tb), :]
    acc = jnp.dot(z_blk, w_ref[...], preferred_element_type=jnp.float32)
    o_ref[...] = (acc + b_ref[...].astype(jnp.float32)).astype(o_ref.dtype)


def _round_up(x, m):
    return (x + m - 1) // m * m


def _vmem_capacity_bytes():
    # Per-chip physical VMEM (128 MiB on v5e/v6e, 64 MiB on v7x). Fall back to
    # the most conservative value if the query is unavailable.
    try:
        return int(pltpu.get_tpu_info().vmem_capacity_bytes)
    except Exception:
        return 64 << 20


def _pick_tiles(B_pad, V_pad, z_bytes, w_bytes, b_bytes, out_bytes, vmem_limit):
    """VMEM-budget-driven tile selection (lane-dense tv, sublane-aligned tb)."""
    D = LATENT_DIM
    tb = B_pad if B_pad <= 128 else 128

    # Leave headroom inside the scoped-VMEM limit for Mosaic scratch.
    budget = (vmem_limit * 4) // 5
    fixed = 2 * B_pad * D * z_bytes                       # resident z (count 2 bufs)
    per_tv = 2 * (D * w_bytes + b_bytes + tb * out_bytes)  # double-buffered W/bias/out
    tv = (max(budget - fixed, per_tv) // per_tv // 128) * 128

    # Regime caps: small-batch decode-style calls get very large vocab tiles to
    # amortize per-step overhead; large-batch calls keep the output block sane.
    tv_cap = 65536 if tb <= 32 else 16384
    tv = max(128, min(tv, tv_cap, V_pad))

    # Megacore / pipeline hygiene: prefer >= 8 vocab tiles (>= 2 TCs x depth 4)
    # when the vocab is big enough, so both cores get work and the DMA pipeline
    # actually overlaps.
    want_tiles = min(8, V_pad // 128)
    if want_tiles >= 2:
        tv = min(tv, max(128, (V_pad // want_tiles) // 128 * 128))
    return tb, tv


def hyper_adapter(z, w_t, b, *, out_dtype=None):
    """HyperAdapter forward: z @ w_t + b  (== torch F.linear(z, W, b)).

    z   : (B, LATENT_DIM)
    w_t : (LATENT_DIM, V)  transposed nn.Linear weight. bf16 recommended for
          large V (halves the dominant W HBM stream; accumulation stays f32).
    b   : (V,)             keep f32 for torch-faithful results.
    out_dtype : output dtype (default = z.dtype). bf16 is recommended when
          B >= 64, where the output writeback dominates HBM traffic.
    """
    B, D = z.shape
    D2, V = w_t.shape
    assert D == D2 == LATENT_DIM
    assert b.shape == (V,)
    out_dtype = jnp.dtype(out_dtype or z.dtype)

    vmem_cap = _vmem_capacity_bytes()
    vmem_limit = (vmem_cap * 3) // 4        # ~96 MiB on v5e/v6e, ~48 MiB on v7x

    # Lane-dense / sublane-aligned padding (pad is sliced off the output).
    V_pad = _round_up(V, 128)
    B_pad = _round_up(B, 8)
    if B_pad > 128:
        B_pad = _round_up(B_pad, 128)       # tb=128 divides B_pad -> z slice in bounds

    tb, tv = _pick_tiles(
        B_pad, V_pad,
        z.dtype.itemsize, w_t.dtype.itemsize, b.dtype.itemsize, out_dtype.itemsize,
        vmem_limit,
    )

    if B_pad != B:
        z = jnp.pad(z, ((0, B_pad - B), (0, 0)))
    if V_pad != V:
        w_t = jnp.pad(w_t, ((0, 0), (0, V_pad - V)))
        b = jnp.pad(b, (0, V_pad - V))
    b2 = b.reshape(1, V_pad)

    # Grid: vocab OUTER (parallel -> megacore shards the W stream, not dupes it),
    # batch INNER (arbitrary -> W/bias block index constant across it).
    grid = (pl.cdiv(V_pad, tv), B_pad // tb)

    bytes_accessed = (
        z.size * z.dtype.itemsize
        + w_t.size * w_t.dtype.itemsize
        + b2.size * b2.dtype.itemsize
        + B_pad * V_pad * out_dtype.itemsize
    )

    out = pl.pallas_call(
        _hyper_adapter_kernel,
        out_shape=jax.ShapeDtypeStruct((B_pad, V_pad), out_dtype),
        grid_spec=pltpu.PrefetchScalarGridSpec(
            num_scalar_prefetch=0,
            grid=grid,
            in_specs=[
                pl.BlockSpec((B_pad, D), lambda j, i: (0, 0)),  # z: fully resident
                pl.BlockSpec((D, tv), lambda j, i: (0, j)),     # W^T: vocab-keyed
                pl.BlockSpec((1, tv), lambda j, i: (0, j)),     # bias: vocab-keyed
            ],
            out_specs=pl.BlockSpec((tb, tv), lambda j, i: (i, j)),
        ),
        compiler_params=pltpu.CompilerParams(
            dimension_semantics=("parallel", "arbitrary"),
            vmem_limit_bytes=int(vmem_limit),
        ),
        cost_estimate=pl.CostEstimate(
            flops=2 * B_pad * D * V_pad,
            transcendentals=0,
            bytes_accessed=int(bytes_accessed),
        ),
    )(z, w_t, b2)

    if B_pad != B or V_pad != V:
        out = out[:B, :V]
    return out


if __name__ == "__main__":
    key = jax.random.PRNGKey(0)
    kz, kw, kb, kz2 = jax.random.split(key, 4)

    # Deterministic parameters (shapes from nn.Linear(LATENT_DIM, vocab_size)).
    vocab_size = 256
    batch = 8
    bound = 1.0 / (LATENT_DIM ** 0.5)
    w = jax.random.uniform(kw, (vocab_size, LATENT_DIM), jnp.float32, -bound, bound)
    b = jax.random.uniform(kb, (vocab_size,), jnp.float32, -bound, bound)
    w_t = w.T                                   # (LATENT_DIM, vocab_size)
    z = jax.random.normal(kz, (batch, LATENT_DIM), jnp.float32)

    # f32 path — bit-faithful to the PyTorch module.
    out = jax.block_until_ready(hyper_adapter(z, w_t, b))
    ref = z @ w_t + b
    assert out.shape == (batch, vocab_size)
    assert jnp.allclose(out, ref, atol=1e-5, rtol=1e-5)

    # Ragged path — exercises the V%128 != 0 / B%8 != 0 padding (lane-dense
    # stores preserved, pad sliced off).
    v2, b2n = 200, 5
    w2 = jax.random.uniform(kw, (v2, LATENT_DIM), jnp.float32, -bound, bound)
    bb2 = jax.random.uniform(kb, (v2,), jnp.float32, -bound, bound)
    z2 = jax.random.normal(kz2, (b2n, LATENT_DIM), jnp.float32)
    out2 = jax.block_until_ready(hyper_adapter(z2, w2.T, bb2))
    ref2 = z2 @ w2.T + bb2
    assert out2.shape == (b2n, v2)
    assert jnp.allclose(out2, ref2, atol=1e-5, rtol=1e-5)

    # bf16-weight path — recommended for large vocab (halves W HBM traffic,
    # f32 accumulate preserved); looser tolerance for the bf16 inputs.
    z16, w16 = z.astype(jnp.bfloat16), w_t.astype(jnp.bfloat16)
    out16 = jax.block_until_ready(hyper_adapter(z16, w16, b, out_dtype=jnp.float32))
    ref16 = z16.astype(jnp.float32) @ w16.astype(jnp.float32) + b
    assert jnp.allclose(out16, ref16, atol=1e-2, rtol=1e-2)

    # TODO(synk): fp8 weight path for v7x (per-channel scales folded into bias)
    # is left out; bf16 weights are the portable default.

    print("KERNEL_OK")
</pallas_src>

<mosaic_0001>
module attributes {stable_mosaic.version = 11 : i64} {
  func.func @_hyper_adapter_kernel(%arg0: i32, %arg1: i32, %arg2: memref<8x32xf32, #tpu.memory_space<vmem>>, %arg3: memref<32x128xf32, #tpu.memory_space<vmem>>, %arg4: memref<1x128xf32, #tpu.memory_space<vmem>>, %arg5: memref<8x128xf32, #tpu.memory_space<vmem>>) attributes {dimension_semantics = [#tpu.dimension_semantics<parallel>, #tpu.dimension_semantics<arbitrary>], iteration_bounds = array<i64: 2, 1>, scalar_prefetch = 0 : i64, scratch_operands = 0 : i64, tpu.core_type = #tpu.core_type<tc>, window_params = [{pipeline_mode = #tpu.pipeline_mode<synchronous>, transform_indices = @transform_0, window_bounds = array<i64: 8, 32>}, {transform_indices = @transform_1, window_bounds = array<i64: 32, 128>}, {transform_indices = @transform_2, window_bounds = array<i64: 1, 128>}, {transform_indices = @transform_3, window_bounds = array<i64: 8, 128>}]} {
    %c8_i32 = arith.constant 8 : i32
    %0 = arith.muli %arg1, %c8_i32 : i32
    %1 = tpu.assume_multiple %0, 8 : i32
    %2 = arith.index_cast %1 : i32 to index
    %c0 = arith.constant 0 : index
    %3 = vector.load %arg2[%2, %c0] : memref<8x32xf32, #tpu.memory_space<vmem>>, vector<8x32xf32>
    %c0_0 = arith.constant 0 : index
    %c0_1 = arith.constant 0 : index
    %4 = vector.load %arg3[%c0_0, %c0_1] : memref<32x128xf32, #tpu.memory_space<vmem>>, vector<32x128xf32>
    %cst = arith.constant dense<0.000000e+00> : vector<8x128xf32>
    %5 = tpu.matmul %3, %4, %cst {dimension_numbers = #tpu.dot_dimension_numbers<[1], [0], [0], [1], [0, 0, 1, 1], [], []>} : vector<8x32xf32>, vector<32x128xf32>, vector<8x128xf32> -> vector<8x128xf32>
    %c0_2 = arith.constant 0 : index
    %c0_3 = arith.constant 0 : index
    %6 = vector.load %arg4[%c0_2, %c0_3] : memref<1x128xf32, #tpu.memory_space<vmem>>, vector<1x128xf32>
    %7 = vector.broadcast %6 : vector<1x128xf32> to vector<8x128xf32>
    %8 = arith.addf %5, %7 : vector<8x128xf32>
    %c0_4 = arith.constant 0 : index
    %c0_5 = arith.constant 0 : index
    %9 = vector.load %arg5[%c0_4, %c0_5] : memref<8x128xf32, #tpu.memory_space<vmem>>, vector<8x128xf32>
    tpu.vector_store %arg5[%c0_4, %c0_5], %8 {strides = array<i32>} : memref<8x128xf32, #tpu.memory_space<vmem>>, vector<8x128xf32>,
    return
  }
  func.func @transform_0(%arg0: i32, %arg1: i32) -> (i32, i32) {
    %c0_i32 = arith.constant 0 : i32
    %c0_i32_0 = arith.constant 0 : i32
    %c0_i32_1 = arith.constant 0 : i32
    return %c0_i32, %c0_i32_0 : i32, i32
  }
  func.func @transform_1(%arg0: i32, %arg1: i32) -> (i32, i32) {
    %c0_i32 = arith.constant 0 : i32
    %c0_i32_0 = arith.constant 0 : i32
    return %c0_i32, %arg0 : i32, i32
  }
  func.func @transform_2(%arg0: i32, %arg1: i32) -> (i32, i32) {
    %c0_i32 = arith.constant 0 : i32
    %c0_i32_0 = arith.constant 0 : i32
    return %c0_i32, %arg0 : i32, i32
  }
  func.func @transform_3(%arg0: i32, %arg1: i32) -> (i32, i32) {
    %c0_i32 = arith.constant 0 : i32
    return %arg1, %arg0 : i32, i32
  }
}

</mosaic_0001>

<llo_original>
// kernel: tpu_custom_call.1
$region0: #{tpu_custom_call.1}
  #allocation0 [shape = 'u32[]', space=smem, size = 0x4, offset = 0x4, fixed_abs, tag = 'smem constant byte address 0x4 - core index']
  #allocation1 [shape = 'u32[144,128]{1,0:T(1,128)}', space=vmem, size = 0x12000, scoped, tag = 'internal scratch']
  %s0 = inlined_call_operand.hbm [shape: f32[8,32], index: 0, kind: input, shape index: {}]
  %s1 = inlined_call_operand.hbm [shape: f32[32,256], index: 1, kind: input, shape index: {}]
  %s2 = inlined_call_operand.vmem [shape: f32[1,256], index: 2, kind: input, shape index: {}]
  %s3 = inlined_call_operand.hbm [shape: f32[8,256], index: 3, kind: output, shape index: {}]
  %s4 = sld [smem:[#allocation0]]
  $region53: #{tpu_custom_call.1} parent=0
    _
  %s6 = ssub.s32 1, %s4
  %s7 = scalar_select 0, %s6, %s4
  $region1: #{tpu_custom_call.1} parent=0
    #allocation2 [shape = 'u8[4096]{0}', space=vmem, size = 0x1000, scoped, tag = 'input window, operand 0, single buffered']
    #allocation3 [shape = 's32[2]{0}', space=sflag, size = 0x8, scoped, tag = 'scoped memory for tpu_custom_call.1']
    #allocation4 [shape = 's32[2]{0}', space=sflag, size = 0x8, scoped, tag = 'scoped memory for tpu_custom_call.1']
    #allocation5 [shape = 'u8[32768]{0}', space=vmem, size = 0x8000, scoped, tag = 'input window, operand 1']
    #allocation6 [shape = 's32[2]{0}', space=sflag, size = 0x8, scoped, tag = 'scoped memory for tpu_custom_call.1']
    #allocation7 [shape = 'u8[8192]{0}', space=vmem, size = 0x2000, scoped, tag = 'output window, operand 0']
    %8 = vsyncpa [#allocation3], 0
    %9 = vsyncpa [#allocation6], 0
    %s10 = scalar_lea.sflag [#allocation6], 1
    %11 = vsyncpa %s10, 0
    %12 = vsyncpa [#allocation4], 0
    %s13 = scalar_lea.sflag [#allocation4], 1
    %14 = vsyncpa %s13, 0
    loop: start=0, step=1, limit=4
    $region2: #{tpu_custom_call.1} parent=1 // loop_pre_header
      _
    $region3: #{tpu_custom_call.1} parent=1 // loop_header
      %s16 = sphi 0, %s20
      %p17 = scmp.ge.s32.totalorder %s16, 4
      %s23 = sphi 0, %s35
      %s24 = sphi 0, %s31
      %s25 = sphi 0, %s23
      %s26 = sphi 0, %s24
      %s27 = sphi 0, %s25
      %s28 = sphi 0, %s26
      %s36 = sphi 0, %s36
      %s38 = sphi 0, %s36
      %s39 = sphi 0, %s38
      %s53 = sphi 0, %s39
      %s59 = sphi 0, %s61
      %s62 = sphi 0, %s59
      %s63 = sphi 0, %s62
      %s79 = sphi 0, %s63
      %s85 = sphi 0, %s87
      %s88 = sphi 0, %s85
      %s89 = sphi 0, %s88
      %s105 = sphi 0, %s89
      %s113 = sphi 0, %s115
      %s116 = sphi 0, %s113
      %s117 = sphi 0, %s116
      %s133 = sphi 0, %s117
    $region4: #{tpu_custom_call.1} parent=1 // loop_header_branch
      %19 = sbr.rel (%p17) target = $region8
    $region5: #{tpu_custom_call.1} parent=1 // loop_body
      %s21 = ssub.s32 %s16, 1
      %s22 = ssub.s32 %s16, 2
      %s29 = sadd.s32 1, %s24
      %p30 = scmp.ge.s32.totalorder %s29, 1
      %s31 = scalar_select %p30, 0, %s29
      %s32 = sadd.s32 1, %s23
      %s33 = scalar_select %p30, %s32, %s23
      %p34 = scmp.ge.s32.totalorder %s33, 2
      %s35 = scalar_select %p34, 0, %s33
      %s37 = sadd.s32 %s36, 1
      %p40 = scmp.eq.s32.totalorder %s16, 1
      %p41 = scmp.ne.s32.totalorder %s36, %s38
      %p42 = scmp.eq.s32.totalorder %s16, 0
      %p43 = por %p41, %p42
      %p44 = scmp.ne.s32.totalorder %s36, %s38
      %p45 = scmp.eq.s32.totalorder %s21, 1
      %p46 = por %p44, %p45
      %p47 = scmp.ne.s32.totalorder %s38, %s39
      %p48 = scmp.eq.s32.totalorder %s21, 0
      %p49 = por %p47, %p48
      %p50 = scmp.ne.s32.totalorder %s38, %s39
      %p51 = scmp.eq.s32.totalorder %s22, 1
      %p52 = por %p50, %p51
      %p54 = scmp.ne.s32.totalorder %s39, %s53
      %p55 = scmp.eq.s32.totalorder %s22, 0
      %p56 = por %p54, %p55
      %s57 = ssub.s32 %s23, %s35
      %p58 = scmp.eq.s32.totalorder %s57, 0
      %s60 = sadd.s32 %s59, 1
      %s61 = scalar_select %p58, %s59, %s60
      %p64 = pneg %p58
      %p65 = scmp.eq.s32.totalorder %s16, 1
      %p66 = por %p64, %p65
      %p67 = scmp.ne.s32.totalorder %s59, %s62
      %p68 = scmp.eq.s32.totalorder %s16, 0
      %p69 = por %p67, %p68
      %p70 = scmp.ne.s32.totalorder %s59, %s62
      %p71 = scmp.eq.s32.totalorder %s21, 1
      %p72 = por %p70, %p71
      %p73 = scmp.ne.s32.totalorder %s62, %s63
      %p74 = scmp.eq.s32.totalorder %s21, 0
      %p75 = por %p73, %p74
      %p76 = scmp.ne.s32.totalorder %s62, %s63
      %p77 = scmp.eq.s32.totalorder %s22, 1
      %p78 = por %p76, %p77
      %p80 = scmp.ne.s32.totalorder %s63, %s79
      %p81 = scmp.eq.s32.totalorder %s22, 0
      %p82 = por %p80, %p81
      %s83 = ssub.s32 %s23, %s35
      %p84 = scmp.eq.s32.totalorder %s83, 0
      %s86 = sadd.s32 %s85, 1
      %s87 = scalar_select %p84, %s85, %s86
      %p90 = pneg %p84
      %p91 = scmp.eq.s32.totalorder %s16, 1
      %p92 = por %p90, %p91
      %p93 = scmp.ne.s32.totalorder %s85, %s88
      %p94 = scmp.eq.s32.totalorder %s16, 0
      %p95 = por %p93, %p94
      %p96 = scmp.ne.s32.totalorder %s85, %s88
      %p97 = scmp.eq.s32.totalorder %s21, 1
      %p98 = por %p96, %p97
      %p99 = scmp.ne.s32.totalorder %s88, %s89
      %p100 = scmp.eq.s32.totalorder %s21, 0
      %p101 = por %p99, %p100
      %p102 = scmp.ne.s32.totalorder %s88, %s89
      %p103 = scmp.eq.s32.totalorder %s22, 1
      %p104 = por %p102, %p103
      %p106 = scmp.ne.s32.totalorder %s89, %s105
      %p107 = scmp.eq.s32.totalorder %s22, 0
      %p108 = por %p106, %p107
      %s109 = ssub.s32 %s24, %s31
      %s110 = ssub.s32 %s23, %s35
      %s111 = sor.u32 %s109, %s110
      %p112 = scmp.eq.s32.totalorder %s111, 0
      %s114 = sadd.s32 %s113, 1
      %s115 = scalar_select %p112, %s113, %s114
      %p118 = pneg %p112
      %p119 = scmp.eq.s32.totalorder %s16, 1
      %p120 = por %p118, %p119
      %p121 = scmp.ne.s32.totalorder %s113, %s116
      %p122 = scmp.eq.s32.totalorder %s16, 0
      %p123 = por %p121, %p122
      %p124 = scmp.ne.s32.totalorder %s113, %s116
      %p125 = scmp.eq.s32.totalorder %s21, 1
      %p126 = por %p124, %p125
      %p127 = scmp.ne.s32.totalorder %s116, %s117
      %p128 = scmp.eq.s32.totalorder %s21, 0
      %p129 = por %p127, %p128
      %p130 = scmp.ne.s32.totalorder %s116, %s117
      %p131 = scmp.eq.s32.totalorder %s22, 1
      %p132 = por %p130, %p131
      %p134 = scmp.ne.s32.totalorder %s117, %s133
      %p135 = scmp.eq.s32.totalorder %s22, 0
      %p136 = por %p134, %p135
      %p137 = scmp.le.s32.totalorder 1, %s16
      %p138 = scmp.lt.s32.totalorder %s16, 3
      %p139 = pnand %p137, %p138
      %p140 = pneg %p139
      // Predicated region
      $region9: #{tpu_custom_call.1} parent=5 // pred_check
        _
      $region10: #{tpu_custom_call.1} parent=5 // pred_check_branch
        %142 = sbr.rel (%p139) target = $region12
      $region11: #{tpu_custom_call.1} parent=5 // pred_region
        %s143 = ssub.s32 %s16, 1
        // Predicated region
        $region13: #{tpu_custom_call.1} parent=11 // pred_check
          %p144 = pneg %p49
        $region14: #{tpu_custom_call.1} parent=11 // pred_check_branch
          %146 = sbr.rel (%p144) target = $region16
        $region15: #{tpu_custom_call.1} parent=11 // pred_region
          %s148 = ssub.s32 128, 128
          %149 = vsyncadd [#allocation3], %s148
          %s151 = sshll.u32 [#allocation2], 4
          %s152 = int_to_ptr.vmem [resolvable:$true] %s151
          %154 = dma.hbm_to_vmem [thread:$0]  %s0, 128, %s152, [#allocation3]
        $region16: #{tpu_custom_call.1} parent=11 // pred_fallthru
          _
      $region12: #{tpu_custom_call.1} parent=5 // pred_fallthru
        _
      %p155 = scmp.lt.s32.totalorder %s16, 2
      // Predicated region
      $region17: #{tpu_custom_call.1} parent=5 // pred_check
        %p156 = pneg %p155
      $region18: #{tpu_custom_call.1} parent=5 // pred_check_branch
        %158 = sbr.rel (%p156) target = $region20
      $region19: #{tpu_custom_call.1} parent=5 // pred_region
        // Predicated region
        $region21: #{tpu_custom_call.1} parent=19 // pred_check
          %p159 = pneg %p69
        $region22: #{tpu_custom_call.1} parent=19 // pred_check_branch
          %161 = sbr.rel (%p159) target = $region24
        $region23: #{tpu_custom_call.1} parent=19 // pred_region
          %s162 = sand.u32 %s59, 1
          %s163 = scalar_lea.sflag [#allocation6], %s162
          %s164 = sand.u32 %s59, 1
          %s165 = smul.addr %s164, 32
          %s166 = scalar_lea.vmem [#allocation5], %s165
          %s168 = ssub.s32 512, 512
          %169 = vsyncadd %s163, %s168
          %s170 = smul.addr %s23, 128
          %s171 = scalar_lea.hbm %s1, %s170
          %s172 = sshll.u32 %s166, 4
          %s173 = int_to_ptr.vmem [resolvable:$true] %s172
          %178 = dma.hbm_to_vmem [thread:$0]  %s171, 512, %s173, %s163, 256, 128, 8
        $region24: #{tpu_custom_call.1} parent=19 // pred_fallthru
          _
        // Predicated region
        $region25: #{tpu_custom_call.1} parent=19 // pred_check
          %p179 = pneg %p95
        $region26: #{tpu_custom_call.1} parent=19 // pred_check_branch
          %181 = sbr.rel (%p179) target = $region28
        $region27: #{tpu_custom_call.1} parent=19 // pred_region
          %p182 = scmp.lt.s32.totalorder %s23, 1
          %s183 = scalar_select %p182, %s23, 1
          %s184 = scalar_lea.vmem %s2, %s183
        $region28: #{tpu_custom_call.1} parent=19 // pred_fallthru
          _
      $region20: #{tpu_custom_call.1} parent=5 // pred_fallthru
        _
      %p185 = scmp.le.s32.totalorder 1, %s16
      %p186 = scmp.lt.s32.totalorder %s16, 3
      %p187 = pnand %p185, %p186
      %p188 = pneg %p187
      // Predicated region
      $region29: #{tpu_custom_call.1} parent=5 // pred_check
        _
      $region30: #{tpu_custom_call.1} parent=5 // pred_check_branch
        %190 = sbr.rel (%p187) target = $region32
      $region31: #{tpu_custom_call.1} parent=5 // pred_region
        %s191 = ssub.s32 %s16, 1
        // Predicated region
        $region33: #{tpu_custom_call.1} parent=31 // pred_check
          %p192 = pneg %p49
        $region34: #{tpu_custom_call.1} parent=31 // pred_check_branch
          %194 = sbr.rel (%p192) target = $region36
        $region35: #{tpu_custom_call.1} parent=31 // pred_region
          %195 = dma.done [#allocation3], 128
        $region36: #{tpu_custom_call.1} parent=31 // pred_fallthru
          _
        %s196 = sand.u32 %s62, 1
        %s197 = scalar_lea.sflag [#allocation6], %s196
        %s198 = sand.u32 %s62, 1
        %s199 = smul.addr %s198, 32
        %s200 = scalar_lea.vmem [#allocation5], %s199
        // Predicated region
        $region37: #{tpu_custom_call.1} parent=31 // pred_check
          %p201 = pneg %p75
        $region38: #{tpu_custom_call.1} parent=31 // pred_check_branch
          %203 = sbr.rel (%p201) target = $region40
        $region39: #{tpu_custom_call.1} parent=31 // pred_region
          %204 = dma.done %s197, 512
        $region40: #{tpu_custom_call.1} parent=31 // pred_fallthru
          _
        %p205 = pneg %p49
        %p206 = pneg %p46
        %s207 = sand.u32 %s62, 1
        %s208 = scalar_lea.sflag [#allocation6], %s207
        %s209 = sand.u32 %s62, 1
        %s210 = smul.addr %s209, 32
        %s211 = scalar_lea.vmem [#allocation5], %s210
        %p212 = pneg %p75
        %p213 = pneg %p72
        %p214 = scmp.lt.s32.totalorder %s25, 1
        %s215 = scalar_select %p214, %s25, 1
        %s216 = scalar_lea.vmem %s2, %s215
        %p217 = pneg %p101
        %p218 = pneg %p98
        %p219 = pneg %p129
        %p220 = pneg %p126
        %s221 = sand.u32 %s116, 1
        %s222 = scalar_lea.sflag [#allocation4], %s221
        %s223 = sand.u32 %s116, 1
        %s224 = smul.addr %s223, 8
        %s225 = scalar_lea.vmem [#allocation7], %s224
        %p226 = scmp.lt.s32.totalorder %s25, 1
        %s227 = scalar_select %p226, %s25, 1
        %s228 = scalar_lea.vmem %s2, %s227
        %s229 = smul.u32 %s26, 8
        %s230 = scalar_lea.vmem [#allocation2], %s229
        %v231 = vld [vmem:[%s230] sm:$0xff]
        %v232 = vld [vmem:[%s200] sm:$0xff]
        %v233 = vld [vmem:[%s200 + $0x8] sm:$0xff]
        %v234 = vld [vmem:[%s200 + $0x10] sm:$0xff]
        %v235 = vld [vmem:[%s200 + $0x18] sm:$0xff]
        %v236 = vld [vmem:[%s228] sm:$0x1]
        %v238 = vlaneseq
        %v239 = vshrl.u32 %v238, 7
        %v240 = vsub.s32 0, %v239
        %v241 = vrot.slane %v236, %v240
        %vm243 = vcmask 261120
        %v245 = vsel %vm243, %v231, 0
        %247 = vmatprep.subr.mxu0 0.0
        %248 = vmatpush1.msra.mxu0 0.0
        %249 = vmatprep.subr.mxu0 0.0
        %250 = vmatpush1.msra.mxu0 0.0
        %251 = vmatprep.subr.mxu0 0.0
        %252 = vmatpush1.msra.mxu0 0.0
        %253 = vmatprep.subr.mxu0 0.0
        %254 = vmatpush1.msra.mxu0 0.0
        %255 = vmatprep.subr.mxu0 0.0
        %256 = vmatpush1.msra.mxu0 0.0
        %257 = vmatprep.subr.mxu0 0.0
        %258 = vmatpush1.msra.mxu0 0.0
        %259 = vmatprep.subr.mxu0 0.0
        %260 = vmatpush1.msra.mxu0 0.0
        %261 = vmatprep.subr.mxu0 0.0
        %262 = vmatpush1.msra.mxu0 0.0
        %263 = vmatprep.subr.mxu0 0.0
        %264 = vmatpush1.msra.mxu0 0.0
        %265 = vmatprep.subr.mxu0 0.0
        %266 = vmatpush1.msra.mxu0 0.0
        %267 = vmatprep.subr.mxu0 0.0
        %268 = vmatpush1.msra.mxu0 0.0
        %269 = vmatprep.subr.mxu0 0.0
        %270 = vmatpush1.msra.mxu0 0.0
        %271 = vmatprep.subr.mxu0 0.0
        %272 = vmatpush1.msra.mxu0 %v235
        %273 = vmatprep.subr.mxu0 0.0
        %274 = vmatpush1.msra.mxu0 %v234
        %275 = vmatprep.subr.mxu0 0.0
        %276 = vmatpush1.msra.mxu0 %v233
        %277 = vmatprep.subr.mxu0 0.0
        %278 = vmatpush1.msra.mxu0 %v232
        %279 = vmatprep.subr.mxu0 0.0
        %280 = vmatpush2.msra.mxu0 0.0
        %281 = vmatprep.subr.mxu0 0.0
        %282 = vmatpush2.msra.mxu0 0.0
        %283 = vmatprep.subr.mxu0 0.0
        %284 = vmatpush2.msra.mxu0 0.0
        %285 = vmatprep.subr.mxu0 0.0
        %286 = vmatpush2.msra.mxu0 0.0
        %287 = vmatprep.subr.mxu0 0.0
        %288 = vmatpush2.msra.mxu0 0.0
        %289 = vmatprep.subr.mxu0 0.0
        %290 = vmatpush2.msra.mxu0 0.0
        %291 = vmatprep.subr.mxu0 0.0
        %292 = vmatpush2.msra.mxu0 0.0
        %293 = vmatprep.subr.mxu0 0.0
        %294 = vmatpush2.msra.mxu0 0.0
        %295 = vmatprep.subr.mxu0 0.0
        %296 = vmatpush2.msra.mxu0 0.0
        %297 = vmatprep.subr.mxu0 0.0
        %298 = vmatpush2.msra.mxu0 0.0
        %299 = vmatprep.subr.mxu0 0.0
        %300 = vmatpush2.msra.mxu0 0.0
        %301 = vmatprep.subr.mxu0 0.0
        %302 = vmatpush2.msra.mxu0 0.0
        %303 = vmatprep.subr.mxu0 0.0
        %304 = vmatpush2.msra.mxu0 0.0
        %305 = vmatprep.subr.mxu0 0.0
        %306 = vmatpush2.msra.mxu0 0.0
        %307 = vmatprep.subr.mxu0 0.0
        %308 = vmatpush2.msra.mxu0 0.0
        %309 = vmatprep.subr.mxu0 0.0
        %310 = vmatpush2.msra.mxu0 0.0
        %311 = vmatprep.mubr.f32.mxu0 0.0
        %312 = vmatmul.mubr.f32.gmra.mxu0 %v245
        %v313 = vpop.f32.mrf.mxu0
        %v314 = vadd.f32 %v241, %v313
        %v315 = vpop.f32.mrf.mxu0
        %316 = vdwg.mxu0
        %317 = vst [vmem:[%s225] sm:$0xff] %v314
        %s318 = sand.u32 %s116, 1
        %s319 = scalar_lea.sflag [#allocation4], %s318
        %s320 = sand.u32 %s116, 1
        %s321 = smul.addr %s320, 8
        %s322 = scalar_lea.vmem [#allocation7], %s321
        // Predicated region
        $region41: #{tpu_custom_call.1} parent=31 // pred_check
          %p323 = pneg %p126
        $region42: #{tpu_custom_call.1} parent=31 // pred_check_branch
          %325 = sbr.rel (%p323) target = $region44
        $region43: #{tpu_custom_call.1} parent=31 // pred_region
          %s327 = ssub.s32 128, 128
          %328 = vsyncadd %s319, %s327
          %s329 = smul.addr %s26, 2
          %s330 = sadd.s32 %s25, %s329
          %s331 = smul.addr %s330, 128
          %s332 = scalar_lea.hbm %s3, %s331
          %s334 = sshll.u32 %s322, 4
          %s335 = int_to_ptr.vmem [resolvable:$true] %s334
          %337 = dma.vmem_to_hbm [thread:$0]  %s335, 128, %s332, %s319
        $region44: #{tpu_custom_call.1} parent=31 // pred_fallthru
          _
      $region32: #{tpu_custom_call.1} parent=5 // pred_fallthru
        _
      %p338 = scmp.le.s32.totalorder 2, %s16
      // Predicated region
      $region45: #{tpu_custom_call.1} parent=5 // pred_check
        %p339 = pneg %p338
      $region46: #{tpu_custom_call.1} parent=5 // pred_check_branch
        %341 = sbr.rel (%p339) target = $region48
      $region47: #{tpu_custom_call.1} parent=5 // pred_region
        %s342 = ssub.s32 %s16, 2
        // Predicated region
        $region49: #{tpu_custom_call.1} parent=47 // pred_check
          %p343 = pneg %p132
        $region50: #{tpu_custom_call.1} parent=47 // pred_check_branch
          %345 = sbr.rel (%p343) target = $region52
        $region51: #{tpu_custom_call.1} parent=47 // pred_region
          %s346 = sand.u32 %s117, 1
          %s347 = scalar_lea.sflag [#allocation4], %s346
          %s348 = sand.u32 %s117, 1
          %s349 = smul.addr %s348, 8
          %s350 = scalar_lea.vmem [#allocation7], %s349
          %351 = dma.done %s347, 128
        $region52: #{tpu_custom_call.1} parent=47 // pred_fallthru
          _
      $region48: #{tpu_custom_call.1} parent=5 // pred_fallthru
        _
    $region6: #{tpu_custom_call.1} parent=1 // loop_footer
      %s20 = sadd.s32 1, %s16
    $region7: #{tpu_custom_call.1} parent=1 // loop_footer_branch
      %15 = sbr.rel target = $region3
    $region8: #{tpu_custom_call.1} parent=1 // loop_exit
      _
    %352 = vsyncpa [#allocation3], 1
    %s353 = scalar_lea.sflag [#allocation3], 1
    %354 = vsyncpa %s353, 1
    %355 = vsyncpa [#allocation6], 1
    %s356 = scalar_lea.sflag [#allocation6], 1
    %357 = vsyncpa %s356, 1
    %358 = vsyncpa [#allocation4], 1
    %s359 = scalar_lea.sflag [#allocation4], 1
    %360 = vsyncpa %s359, 1

</llo_original>
